<compile_context>
chip_gen: v7x
topology: tpu7x:2x2x1
jax: 0.10.0
libtpu: 0.0.40
codegen_flags: <defaults>
</compile_context>

<pallas_src>
import functools
import math

import jax
import jax.numpy as jnp
from jax import lax
from jax.experimental import pallas as pl
from jax.experimental.pallas import tpu as pltpu


def _round_up(n, m):
    return ((n + m - 1) // m) * m


def _pick_tile(n, cap):
    """Largest tile <= cap that divides n and is a multiple of 8 (or == n)."""
    t = min(cap, n)
    while t > 1:
        if n % t == 0 and (t % 8 == 0 or t == n):
            return t
        t -= 1
    return n


# ---------------------------------------------------------------------------
# Kernel 1: row-tiled QKV projection (q is pre-scaled by 1/sqrt(D)).
# ---------------------------------------------------------------------------
def _qkv_proj_kernel(x_ref, wq_ref, wk_ref, wv_ref, bq_ref, bk_ref, bv_ref,
                     q_ref, k_ref, v_ref, *, scale):
    x = x_ref[...]                                     # (TM, Dp) compute dtype
    q = jnp.dot(x, wq_ref[...], preferred_element_type=jnp.float32) + bq_ref[...]
    k = jnp.dot(x, wk_ref[...], preferred_element_type=jnp.float32) + bk_ref[...]
    v = jnp.dot(x, wv_ref[...], preferred_element_type=jnp.float32) + bv_ref[...]
    # Fold the softmax scale into Q (S*D work instead of S*S per KV block).
    q_ref[...] = (q * scale).astype(q_ref.dtype)
    k_ref[...] = k.astype(k_ref.dtype)
    v_ref[...] = v.astype(v_ref.dtype)


# ---------------------------------------------------------------------------
# Kernel 2: flash-style attention (online softmax over KV tiles) + out_proj.
# ---------------------------------------------------------------------------
def _flash_attn_outproj_kernel(q_ref, k_ref, v_ref, wo_ref, bo_ref, o_ref,
                               m_sc, l_sc, acc_sc):
    kv = pl.program_id(2)

    @pl.when(kv == 0)
    def _():
        m_sc[...] = jnp.full_like(m_sc, -jnp.inf)
        l_sc[...] = jnp.zeros_like(l_sc)
        acc_sc[...] = jnp.zeros_like(acc_sc)

    q = q_ref[0]                                       # (TQ, Dp), scale folded in
    k = k_ref[0]                                       # (TK, Dp)
    v = v_ref[0]                                       # (TK, Dp)

    # Contract the feature axis of both operands directly (no k.T relayout).
    s = lax.dot_general(q, k, (((1,), (1,)), ((), ())),
                        preferred_element_type=jnp.float32)   # (TQ, TK) f32

    m_prev = m_sc[...]
    m_new = jnp.maximum(m_prev, jnp.max(s, axis=-1, keepdims=True))
    alpha = jnp.exp(m_prev - m_new)
    p = jnp.exp(s - m_new)                                     # f32
    l_sc[...] = alpha * l_sc[...] + jnp.sum(p, axis=-1, keepdims=True)
    acc_sc[...] = alpha * acc_sc[...] + jnp.dot(
        p.astype(v.dtype), v, preferred_element_type=jnp.float32)
    m_sc[...] = m_new

    @pl.when(kv == pl.num_programs(2) - 1)
    def _():
        # Reciprocal runs once per q-tile in the epilogue (off the inner loop),
        # so keep it exact here.
        attn = acc_sc[...] * pl.reciprocal(l_sc[...], approx=False)   # (TQ, Dp)
        y = jnp.dot(attn.astype(wo_ref.dtype), wo_ref[...],
                    preferred_element_type=jnp.float32) + bo_ref[...]
        o_ref[0] = y.astype(o_ref.dtype)


# ---------------------------------------------------------------------------
# Wrapper
# ---------------------------------------------------------------------------
def self_attention(x, w_in, b_in, w_out, b_out, *,
                   compute_dtype=jnp.float32,
                   row_block=256, q_block=128, kv_block=128):
    """x: (B, S, D). w_in: (D, 3D), b_in: (3D,), w_out: (D, D), b_out: (D,)."""
    B, S, D = x.shape
    out_dtype = x.dtype
    Dp = _round_up(D, 128)                 # lane-dense feature dim
    scale = 1.0 / math.sqrt(D)             # scale uses the *original* dim

    # Split the fused in_proj weight into Wq/Wk/Wv outside the kernel so the
    # kernel never lane-slices a (S, 3D) intermediate.
    wq, wk, wv = w_in[:, :D], w_in[:, D:2 * D], w_in[:, 2 * D:]
    bq, bk, bv = b_in[:D], b_in[D:2 * D], b_in[2 * D:]

    def pad_mat(w):
        return jnp.zeros((Dp, Dp), w.dtype).at[:D, :D].set(w)

    def pad_vec(b):
        return jnp.zeros((1, Dp), b.dtype).at[0, :D].set(b)

    cd = compute_dtype
    x_p = jnp.zeros((B, S, Dp), x.dtype).at[:, :, :D].set(x)
    x_rows = x_p.reshape(B * S, Dp).astype(cd)          # collapse B,S -> rows
    wq_p = pad_mat(wq).astype(cd)
    wk_p = pad_mat(wk).astype(cd)
    wv_p = pad_mat(wv).astype(cd)
    wo_p = pad_mat(w_out).astype(cd)
    bq_p = pad_vec(bq).astype(jnp.float32)
    bk_p = pad_vec(bk).astype(jnp.float32)
    bv_p = pad_vec(bv).astype(jnp.float32)
    bo_p = pad_vec(b_out).astype(jnp.float32)

    rows = B * S
    TM = _pick_tile(rows, row_block)

    # --- Kernel 1: QKV projection over row tiles --------------------------
    q, k, v = pl.pallas_call(
        functools.partial(_qkv_proj_kernel, scale=scale),
        out_shape=(
            jax.ShapeDtypeStruct((rows, Dp), cd),
            jax.ShapeDtypeStruct((rows, Dp), cd),
            jax.ShapeDtypeStruct((rows, Dp), cd),
        ),
        grid_spec=pltpu.PrefetchScalarGridSpec(
            num_scalar_prefetch=0,
            grid=(rows // TM,),
            in_specs=[
                pl.BlockSpec((TM, Dp), lambda i: (i, 0)),     # x rows
                pl.BlockSpec((Dp, Dp), lambda i: (0, 0)),     # Wq (resident)
                pl.BlockSpec((Dp, Dp), lambda i: (0, 0)),     # Wk
                pl.BlockSpec((Dp, Dp), lambda i: (0, 0)),     # Wv
                pl.BlockSpec((1, Dp), lambda i: (0, 0)),      # bq
                pl.BlockSpec((1, Dp), lambda i: (0, 0)),      # bk
                pl.BlockSpec((1, Dp), lambda i: (0, 0)),      # bv
            ],
            out_specs=(
                pl.BlockSpec((TM, Dp), lambda i: (i, 0)),
                pl.BlockSpec((TM, Dp), lambda i: (i, 0)),
                pl.BlockSpec((TM, Dp), lambda i: (i, 0)),
            ),
        ),
        compiler_params=pltpu.CompilerParams(
            dimension_semantics=("parallel",),
            vmem_limit_bytes=32 * 1024 * 1024),
    )(x_rows, wq_p, wk_p, wv_p, bq_p, bk_p, bv_p)

    q = q.reshape(B, S, Dp)
    k = k.reshape(B, S, Dp)
    v = v.reshape(B, S, Dp)

    TQ = _pick_tile(S, q_block)
    TK = _pick_tile(S, kv_block)

    # --- Kernel 2: flash attention + fused out_proj ------------------------
    out_p = pl.pallas_call(
        _flash_attn_outproj_kernel,
        out_shape=jax.ShapeDtypeStruct((B, S, Dp), out_dtype),
        grid_spec=pltpu.PrefetchScalarGridSpec(
            num_scalar_prefetch=0,
            grid=(B, S // TQ, S // TK),                 # KV reduction axis last
            in_specs=[
                pl.BlockSpec((1, TQ, Dp), lambda b, qi, ki: (b, qi, 0)),  # q
                pl.BlockSpec((1, TK, Dp), lambda b, qi, ki: (b, ki, 0)),  # k
                pl.BlockSpec((1, TK, Dp), lambda b, qi, ki: (b, ki, 0)),  # v
                pl.BlockSpec((Dp, Dp), lambda b, qi, ki: (0, 0)),         # w_out
                pl.BlockSpec((1, Dp), lambda b, qi, ki: (0, 0)),          # b_out
            ],
            out_specs=pl.BlockSpec((1, TQ, Dp), lambda b, qi, ki: (b, qi, 0)),
            scratch_shapes=[
                pltpu.VMEM((TQ, 1), jnp.float32),       # running max m
                pltpu.VMEM((TQ, 1), jnp.float32),       # running sum l
                pltpu.VMEM((TQ, Dp), jnp.float32),      # output accumulator
            ],
        ),
        compiler_params=pltpu.CompilerParams(
            dimension_semantics=("parallel", "parallel", "arbitrary"),
            vmem_limit_bytes=32 * 1024 * 1024),
    )(q, k, v, wo_p, bo_p)

    return out_p[:, :, :D]


# ---------------------------------------------------------------------------
# Pure-JAX reference
# ---------------------------------------------------------------------------
def reference_self_attention(x, w_in, b_in, w_out, b_out):
    D = x.shape[-1]
    qkv = jnp.einsum("bsd,df->bsf", x, w_in) + b_in
    q, k, v = jnp.split(qkv, 3, axis=-1)
    scores = jnp.einsum("bqd,bkd->bqk", q, k) / math.sqrt(D)
    weights = jax.nn.softmax(scores, axis=-1)
    out = jnp.einsum("bqk,bkd->bqd", weights, v)
    return jnp.einsum("bsd,de->bse", out, w_out) + b_out


if __name__ == "__main__":
    B, S, D = 2, 16, 32

    key = jax.random.PRNGKey(0)
    kx, kwi, kbi, kwo, kbo = jax.random.split(key, 5)

    bound = 1.0 / math.sqrt(D)
    x = jax.random.normal(kx, (B, S, D), dtype=jnp.float32)
    w_in = jax.random.uniform(kwi, (D, 3 * D), jnp.float32, -bound, bound)
    b_in = jax.random.uniform(kbi, (3 * D,), jnp.float32, -bound, bound)
    w_out = jax.random.uniform(kwo, (D, D), jnp.float32, -bound, bound)
    b_out = jax.random.uniform(kbo, (D,), jnp.float32, -bound, bound)

    ref = reference_self_attention(x, w_in, b_in, w_out, b_out)

    # f32 path; small q/kv tiles so the online-softmax KV loop takes >1 step
    # even at this toy sequence length.
    out_f32 = self_attention(x, w_in, b_in, w_out, b_out,
                             compute_dtype=jnp.float32,
                             q_block=8, kv_block=8)
    out_f32 = jax.block_until_ready(out_f32)
    assert out_f32.shape == (B, S, D)
    assert jnp.allclose(out_f32, ref, atol=1e-5, rtol=1e-5), "f32 mismatch"

    # bf16-operand / f32-accumulate path (MXU-rate path on v5e/v6e/v7x);
    # softmax math stays in f32 inside the kernel.
    out_bf16 = self_attention(x, w_in, b_in, w_out, b_out,
                              compute_dtype=jnp.bfloat16,
                              q_block=8, kv_block=8)
    out_bf16 = jax.block_until_ready(out_bf16)
    assert out_bf16.shape == (B, S, D)
    assert jnp.allclose(out_bf16, ref, atol=5e-2, rtol=5e-2), "bf16 mismatch"

    print("KERNEL_OK")
</pallas_src>

<mosaic_0001>
module attributes {stable_mosaic.version = 11 : i64} {
  func.func @_qkv_proj_kernel(%arg0: i32, %arg1: memref<32x128xf32, #tpu.memory_space<vmem>>, %arg2: memref<128x128xf32, #tpu.memory_space<vmem>>, %arg3: memref<128x128xf32, #tpu.memory_space<vmem>>, %arg4: memref<128x128xf32, #tpu.memory_space<vmem>>, %arg5: memref<1x128xf32, #tpu.memory_space<vmem>>, %arg6: memref<1x128xf32, #tpu.memory_space<vmem>>, %arg7: memref<1x128xf32, #tpu.memory_space<vmem>>, %arg8: memref<32x128xf32, #tpu.memory_space<vmem>>, %arg9: memref<32x128xf32, #tpu.memory_space<vmem>>, %arg10: memref<32x128xf32, #tpu.memory_space<vmem>>) attributes {dimension_semantics = [#tpu.dimension_semantics<parallel>], iteration_bounds = array<i64: 1>, scalar_prefetch = 0 : i64, scratch_operands = 0 : i64, tpu.core_type = #tpu.core_type<tc>, window_params = [{transform_indices = @transform_0, window_bounds = array<i64: 32, 128>}, {pipeline_mode = #tpu.pipeline_mode<synchronous>, transform_indices = @transform_1, window_bounds = array<i64: 128, 128>}, {pipeline_mode = #tpu.pipeline_mode<synchronous>, transform_indices = @transform_2, window_bounds = array<i64: 128, 128>}, {pipeline_mode = #tpu.pipeline_mode<synchronous>, transform_indices = @transform_3, window_bounds = array<i64: 128, 128>}, {pipeline_mode = #tpu.pipeline_mode<synchronous>, transform_indices = @transform_4, window_bounds = array<i64: 1, 128>}, {pipeline_mode = #tpu.pipeline_mode<synchronous>, transform_indices = @transform_5, window_bounds = array<i64: 1, 128>}, {pipeline_mode = #tpu.pipeline_mode<synchronous>, transform_indices = @transform_6, window_bounds = array<i64: 1, 128>}, {transform_indices = @transform_7, window_bounds = array<i64: 32, 128>}, {transform_indices = @transform_8, window_bounds = array<i64: 32, 128>}, {transform_indices = @transform_9, window_bounds = array<i64: 32, 128>}]} {
    %c0 = arith.constant 0 : index
    %c0_0 = arith.constant 0 : index
    %0 = vector.load %arg1[%c0, %c0_0] : memref<32x128xf32, #tpu.memory_space<vmem>>, vector<32x128xf32>
    %c0_1 = arith.constant 0 : index
    %c0_2 = arith.constant 0 : index
    %1 = vector.load %arg2[%c0_1, %c0_2] : memref<128x128xf32, #tpu.memory_space<vmem>>, vector<128x128xf32>
    %cst = arith.constant dense<0.000000e+00> : vector<32x128xf32>
    %2 = tpu.matmul %0, %1, %cst {dimension_numbers = #tpu.dot_dimension_numbers<[1], [0], [0], [1], [0, 0, 1, 1], [], []>} : vector<32x128xf32>, vector<128x128xf32>, vector<32x128xf32> -> vector<32x128xf32>
    %c0_3 = arith.constant 0 : index
    %c0_4 = arith.constant 0 : index
    %3 = vector.load %arg5[%c0_3, %c0_4] : memref<1x128xf32, #tpu.memory_space<vmem>>, vector<1x128xf32>
    %4 = vector.broadcast %3 : vector<1x128xf32> to vector<32x128xf32>
    %5 = arith.addf %2, %4 : vector<32x128xf32>
    %c0_5 = arith.constant 0 : index
    %c0_6 = arith.constant 0 : index
    %6 = vector.load %arg3[%c0_5, %c0_6] : memref<128x128xf32, #tpu.memory_space<vmem>>, vector<128x128xf32>
    %cst_7 = arith.constant dense<0.000000e+00> : vector<32x128xf32>
    %7 = tpu.matmul %0, %6, %cst_7 {dimension_numbers = #tpu.dot_dimension_numbers<[1], [0], [0], [1], [0, 0, 1, 1], [], []>} : vector<32x128xf32>, vector<128x128xf32>, vector<32x128xf32> -> vector<32x128xf32>
    %c0_8 = arith.constant 0 : index
    %c0_9 = arith.constant 0 : index
    %8 = vector.load %arg6[%c0_8, %c0_9] : memref<1x128xf32, #tpu.memory_space<vmem>>, vector<1x128xf32>
    %9 = vector.broadcast %8 : vector<1x128xf32> to vector<32x128xf32>
    %10 = arith.addf %7, %9 : vector<32x128xf32>
    %c0_10 = arith.constant 0 : index
    %c0_11 = arith.constant 0 : index
    %11 = vector.load %arg4[%c0_10, %c0_11] : memref<128x128xf32, #tpu.memory_space<vmem>>, vector<128x128xf32>
    %cst_12 = arith.constant dense<0.000000e+00> : vector<32x128xf32>
    %12 = tpu.matmul %0, %11, %cst_12 {dimension_numbers = #tpu.dot_dimension_numbers<[1], [0], [0], [1], [0, 0, 1, 1], [], []>} : vector<32x128xf32>, vector<128x128xf32>, vector<32x128xf32> -> vector<32x128xf32>
    %c0_13 = arith.constant 0 : index
    %c0_14 = arith.constant 0 : index
    %13 = vector.load %arg7[%c0_13, %c0_14] : memref<1x128xf32, #tpu.memory_space<vmem>>, vector<1x128xf32>
    %14 = vector.broadcast %13 : vector<1x128xf32> to vector<32x128xf32>
    %15 = arith.addf %12, %14 : vector<32x128xf32>
    %cst_15 = arith.constant 0.176776692 : f32
    %16 = vector.broadcast %cst_15 : f32 to vector<32x128xf32>
    %17 = arith.mulf %5, %16 : vector<32x128xf32>
    %c0_16 = arith.constant 0 : index
    %c0_17 = arith.constant 0 : index
    %18 = vector.load %arg8[%c0_16, %c0_17] : memref<32x128xf32, #tpu.memory_space<vmem>>, vector<32x128xf32>
    tpu.vector_store %arg8[%c0_16, %c0_17], %17 {strides = array<i32>} : memref<32x128xf32, #tpu.memory_space<vmem>>, vector<32x128xf32>,
    %c0_18 = arith.constant 0 : index
    %c0_19 = arith.constant 0 : index
    %19 = vector.load %arg9[%c0_18, %c0_19] : memref<32x128xf32, #tpu.memory_space<vmem>>, vector<32x128xf32>
    tpu.vector_store %arg9[%c0_18, %c0_19], %10 {strides = array<i32>} : memref<32x128xf32, #tpu.memory_space<vmem>>, vector<32x128xf32>,
    %c0_20 = arith.constant 0 : index
    %c0_21 = arith.constant 0 : index
    %20 = vector.load %arg10[%c0_20, %c0_21] : memref<32x128xf32, #tpu.memory_space<vmem>>, vector<32x128xf32>
    tpu.vector_store %arg10[%c0_20, %c0_21], %15 {strides = array<i32>} : memref<32x128xf32, #tpu.memory_space<vmem>>, vector<32x128xf32>,
    return
  }
  func.func @transform_0(%arg0: i32) -> (i32, i32) {
    %c0_i32 = arith.constant 0 : i32
    %c0_i32_0 = arith.constant 0 : i32
    return %arg0, %c0_i32 : i32, i32
  }
  func.func @transform_1(%arg0: i32) -> (i32, i32) {
    %c0_i32 = arith.constant 0 : i32
    %c0_i32_0 = arith.constant 0 : i32
    %c0_i32_1 = arith.constant 0 : i32
    return %c0_i32, %c0_i32_0 : i32, i32
  }
  func.func @transform_2(%arg0: i32) -> (i32, i32) {
    %c0_i32 = arith.constant 0 : i32
    %c0_i32_0 = arith.constant 0 : i32
    %c0_i32_1 = arith.constant 0 : i32
    return %c0_i32, %c0_i32_0 : i32, i32
  }
  func.func @transform_3(%arg0: i32) -> (i32, i32) {
    %c0_i32 = arith.constant 0 : i32
    %c0_i32_0 = arith.constant 0 : i32
    %c0_i32_1 = arith.constant 0 : i32
    return %c0_i32, %c0_i32_0 : i32, i32
  }
  func.func @transform_4(%arg0: i32) -> (i32, i32) {
    %c0_i32 = arith.constant 0 : i32
    %c0_i32_0 = arith.constant 0 : i32
    %c0_i32_1 = arith.constant 0 : i32
    return %c0_i32, %c0_i32_0 : i32, i32
  }
  func.func @transform_5(%arg0: i32) -> (i32, i32) {
    %c0_i32 = arith.constant 0 : i32
    %c0_i32_0 = arith.constant 0 : i32
    %c0_i32_1 = arith.constant 0 : i32
    return %c0_i32, %c0_i32_0 : i32, i32
  }
  func.func @transform_6(%arg0: i32) -> (i32, i32) {
    %c0_i32 = arith.constant 0 : i32
    %c0_i32_0 = arith.constant 0 : i32
    %c0_i32_1 = arith.constant 0 : i32
    return %c0_i32, %c0_i32_0 : i32, i32
  }
  func.func @transform_7(%arg0: i32) -> (i32, i32) {
    %c0_i32 = arith.constant 0 : i32
    %c0_i32_0 = arith.constant 0 : i32
    return %arg0, %c0_i32 : i32, i32
  }
  func.func @transform_8(%arg0: i32) -> (i32, i32) {
    %c0_i32 = arith.constant 0 : i32
    %c0_i32_0 = arith.constant 0 : i32
    return %arg0, %c0_i32 : i32, i32
  }
  func.func @transform_9(%arg0: i32) -> (i32, i32) {
    %c0_i32 = arith.constant 0 : i32
    %c0_i32_0 = arith.constant 0 : i32
    return %arg0, %c0_i32 : i32, i32
  }
}

</mosaic_0001>

<llo_original>
// kernel: tpu_custom_call.1
$region0: #{tpu_custom_call.1}
  #allocation0 [shape = 'u32[]', space=smem, size = 0x4, offset = 0x4, fixed_abs, tag = 'smem constant byte address 0x4 - core index']
  #allocation1 [shape = 'u32[144,128]{1,0:T(1,128)}', space=vmem, size = 0x12000, scoped, tag = 'internal scratch']
  %s0 = inlined_call_operand.hbm [shape: f32[32,128], index: 0, kind: input, shape index: {}]
  %s1 = inlined_call_operand.hbm [shape: f32[128,128], index: 1, kind: input, shape index: {}]
  %s2 = inlined_call_operand.hbm [shape: f32[128,128], index: 2, kind: input, shape index: {}]
  %s3 = inlined_call_operand.hbm [shape: f32[128,128], index: 3, kind: input, shape index: {}]
  %s4 = inlined_call_operand.vmem [shape: f32[1,128], index: 4, kind: input, shape index: {}]
  %s5 = inlined_call_operand.vmem [shape: f32[1,128], index: 5, kind: input, shape index: {}]
  %s6 = inlined_call_operand.vmem [shape: f32[1,128], index: 6, kind: input, shape index: {}]
  %s7 = inlined_call_operand.hbm [shape: f32[32,128], index: 7, kind: output, shape index: {0}]
  %s8 = inlined_call_operand.hbm [shape: f32[32,128], index: 8, kind: output, shape index: {1}]
  %s9 = inlined_call_operand.hbm [shape: f32[32,128], index: 9, kind: output, shape index: {2}]
  %10 = xla_tuple %s7, %s8, %s9
  %s11 = sld [smem:[#allocation0]]
  $region70: #{tpu_custom_call.1} parent=0
    _
  %s13 = ssub.s32 1, %s11
  %s14 = scalar_select 0, %s13, %s11
  $region1: #{tpu_custom_call.1} parent=0
    #allocation2 [shape = 'u8[16384]{0}', space=vmem, size = 0x4000, scoped, tag = 'input window, operand 0, single buffered']
    #allocation3 [shape = 's32[1]{0}', space=sflag, size = 0x4, scoped, tag = 'scoped memory for tpu_custom_call.1']
    #allocation4 [shape = 's32[1]{0}', space=sflag, size = 0x4, scoped, tag = 'scoped memory for tpu_custom_call.1']
    #allocation5 [shape = 'u8[65536]{0}', space=vmem, size = 0x10000, scoped, tag = 'input window, operand 1, single buffered']
    #allocation6 [shape = 's32[1]{0}', space=sflag, size = 0x4, scoped, tag = 'scoped memory for tpu_custom_call.1']
    #allocation7 [shape = 'u8[65536]{0}', space=vmem, size = 0x10000, scoped, tag = 'input window, operand 2, single buffered']
    #allocation8 [shape = 'u8[65536]{0}', space=vmem, size = 0x10000, scoped, tag = 'input window, operand 3, single buffered']
    #allocation9 [shape = 's32[1]{0}', space=sflag, size = 0x4, scoped, tag = 'scoped memory for tpu_custom_call.1']
    #allocation10 [shape = 'u8[16384]{0}', space=vmem, size = 0x4000, scoped, tag = 'output window, operand 0, single buffered']
    #allocation11 [shape = 'u8[16384]{0}', space=vmem, size = 0x4000, scoped, tag = 'output window, operand 1, single buffered']
    #allocation12 [shape = 's32[1]{0}', space=sflag, size = 0x4, scoped, tag = 'scoped memory for tpu_custom_call.1']
    #allocation13 [shape = 'u8[16384]{0}', space=vmem, size = 0x4000, scoped, tag = 'output window, operand 2, single buffered']
    %15 = vsyncpa [#allocation3], 0
    %16 = vsyncpa [#allocation6], 0
    %17 = vsyncpa [#allocation9], 0
    %18 = vsyncpa [#allocation4], 0
    %19 = vsyncpa [#allocation12], 0
    // Predicated region
    $region2: #{tpu_custom_call.1} parent=1 // pred_check
      _
    $region3: #{tpu_custom_call.1} parent=1 // pred_check_branch
      %21 = sbr.rel (0) target = $region5
    $region4: #{tpu_custom_call.1} parent=1 // pred_region
      %s23 = ssub.s32 512, 512
      %24 = vsyncadd [#allocation3], %s23
      %s25 = sshll.u32 [#allocation2], 4
      %s26 = int_to_ptr.vmem [resolvable:$true] %s25
      %31 = dma.hbm_to_vmem [thread:$0]  %s0, 512, %s26, [#allocation3], 128, 128, 8
    $region5: #{tpu_custom_call.1} parent=1 // pred_fallthru
      _
    // Predicated region
    $region6: #{tpu_custom_call.1} parent=1 // pred_check
      _
    $region7: #{tpu_custom_call.1} parent=1 // pred_check_branch
      %33 = sbr.rel (0) target = $region9
    $region8: #{tpu_custom_call.1} parent=1 // pred_region
      %s35 = ssub.s32 2048, 2048
      %36 = vsyncadd [#allocation6], %s35
      %s37 = sshll.u32 [#allocation5], 4
      %s38 = int_to_ptr.vmem [resolvable:$true] %s37
      %43 = dma.hbm_to_vmem [thread:$0]  %s1, 2048, %s38, [#allocation6], 128, 128, 8
    $region9: #{tpu_custom_call.1} parent=1 // pred_fallthru
      _
    // Predicated region
    $region10: #{tpu_custom_call.1} parent=1 // pred_check
      _
    $region11: #{tpu_custom_call.1} parent=1 // pred_check_branch
      %45 = sbr.rel (0) target = $region13
    $region12: #{tpu_custom_call.1} parent=1 // pred_region
      %s47 = ssub.s32 2048, 2048
      %48 = vsyncadd [#allocation6], %s47
      %s49 = sshll.u32 [#allocation7], 4
      %s50 = int_to_ptr.vmem [resolvable:$true] %s49
      %55 = dma.hbm_to_vmem [thread:$0]  %s2, 2048, %s50, [#allocation6], 128, 128, 8
    $region13: #{tpu_custom_call.1} parent=1 // pred_fallthru
      _
    // Predicated region
    $region14: #{tpu_custom_call.1} parent=1 // pred_check
      _
    $region15: #{tpu_custom_call.1} parent=1 // pred_check_branch
      %57 = sbr.rel (0) target = $region17
    $region16: #{tpu_custom_call.1} parent=1 // pred_region
      %s59 = ssub.s32 2048, 2048
      %60 = vsyncadd [#allocation9], %s59
      %s61 = sshll.u32 [#allocation8], 4
      %s62 = int_to_ptr.vmem [resolvable:$true] %s61
      %67 = dma.hbm_to_vmem [thread:$0]  %s3, 2048, %s62, [#allocation9], 128, 128, 8
    $region17: #{tpu_custom_call.1} parent=1 // pred_fallthru
      _
    // Predicated region
    $region18: #{tpu_custom_call.1} parent=1 // pred_check
      _
    $region19: #{tpu_custom_call.1} parent=1 // pred_check_branch
      %69 = sbr.rel (0) target = $region21
    $region20: #{tpu_custom_call.1} parent=1 // pred_region
      _
    $region21: #{tpu_custom_call.1} parent=1 // pred_fallthru
      _
    // Predicated region
    $region22: #{tpu_custom_call.1} parent=1 // pred_check
      _
    $region23: #{tpu_custom_call.1} parent=1 // pred_check_branch
      %71 = sbr.rel (0) target = $region25
    $region24: #{tpu_custom_call.1} parent=1 // pred_region
      _
    $region25: #{tpu_custom_call.1} parent=1 // pred_fallthru
      _
    // Predicated region
    $region26: #{tpu_custom_call.1} parent=1 // pred_check
      _
    $region27: #{tpu_custom_call.1} parent=1 // pred_check_branch
      %73 = sbr.rel (0) target = $region29
    $region28: #{tpu_custom_call.1} parent=1 // pred_region
      _
    $region29: #{tpu_custom_call.1} parent=1 // pred_fallthru
      _
    // Predicated region
    $region30: #{tpu_custom_call.1} parent=1 // pred_check
      _
    $region31: #{tpu_custom_call.1} parent=1 // pred_check_branch
      %75 = sbr.rel (0) target = $region33
    $region32: #{tpu_custom_call.1} parent=1 // pred_region
      %76 = dma.done [#allocation3], 512
    $region33: #{tpu_custom_call.1} parent=1 // pred_fallthru
      _
    // Predicated region
    $region34: #{tpu_custom_call.1} parent=1 // pred_check
      _
    $region35: #{tpu_custom_call.1} parent=1 // pred_check_branch
      %78 = sbr.rel (0) target = $region37
    $region36: #{tpu_custom_call.1} parent=1 // pred_region
      %79 = dma.done [#allocation6], 2048
    $region37: #{tpu_custom_call.1} parent=1 // pred_fallthru
      _
    // Predicated region
    $region38: #{tpu_custom_call.1} parent=1 // pred_check
      _
    $region39: #{tpu_custom_call.1} parent=1 // pred_check_branch
      %81 = sbr.rel (0) target = $region41
    $region40: #{tpu_custom_call.1} parent=1 // pred_region
      %82 = dma.done [#allocation6], 2048
    $region41: #{tpu_custom_call.1} parent=1 // pred_fallthru
      _
    // Predicated region
    $region42: #{tpu_custom_call.1} parent=1 // pred_check
      _
    $region43: #{tpu_custom_call.1} parent=1 // pred_check_branch
      %84 = sbr.rel (0) target = $region45
    $region44: #{tpu_custom_call.1} parent=1 // pred_region
      %85 = dma.done [#allocation9], 2048
    $region45: #{tpu_custom_call.1} parent=1 // pred_fallthru
      _
    %v86 = vld [vmem:[#allocation2] sm:$0xff]
    %v87 = vld [vmem:[#allocation2 + $0x8] sm:$0xff]
    %v88 = vld [vmem:[#allocation2 + $0x10] sm:$0xff]
    %v89 = vld [vmem:[#allocation2 + $0x18] sm:$0xff]
    %v90 = vld [vmem:[#allocation5] sm:$0xff]
    %v91 = vld [vmem:[#allocation5 + $0x8] sm:$0xff]
    %v92 = vld [vmem:[#allocation5 + $0x10] sm:$0xff]
    %v93 = vld [vmem:[#allocation5 + $0x18] sm:$0xff]
    %v94 = vld [vmem:[#allocation5 + $0x20] sm:$0xff]
    %v95 = vld [vmem:[#allocation5 + $0x28] sm:$0xff]
    %v96 = vld [vmem:[#allocation5 + $0x30] sm:$0xff]
    %v97 = vld [vmem:[#allocation5 + $0x38] sm:$0xff]
    %v98 = vld [vmem:[#allocation5 + $0x40] sm:$0xff]
    %v99 = vld [vmem:[#allocation5 + $0x48] sm:$0xff]
    %v100 = vld [vmem:[#allocation5 + $0x50] sm:$0xff]
    %v101 = vld [vmem:[#allocation5 + $0x58] sm:$0xff]
    %v102 = vld [vmem:[#allocation5 + $0x60] sm:$0xff]
    %v103 = vld [vmem:[#allocation5 + $0x68] sm:$0xff]
    %v104 = vld [vmem:[#allocation5 + $0x70] sm:$0xff]
    %v105 = vld [vmem:[#allocation5 + $0x78] sm:$0xff]
    %v106 = vld [vmem:[%s4] sm:$0x1]
    %v108 = vlaneseq
    %v109 = vshrl.u32 %v108, 7
    %v110 = vsub.s32 0, %v109
    %v111 = vrot.slane %v106, %v110
    %113 = vmatprep.subr.mxu0 0.0
    %114 = vmatpush1.msra.mxu0 %v90
    %115 = vmatprep.subr.mxu0 0.0
    %116 = vmatpush1.msra.mxu0 %v91
    %117 = vmatprep.subr.mxu0 0.0
    %118 = vmatpush1.msra.mxu0 %v92
    %119 = vmatprep.subr.mxu0 0.0
    %120 = vmatpush1.msra.mxu0 %v93
    %121 = vmatprep.subr.mxu0 0.0
    %122 = vmatpush1.msra.mxu0 %v94
    %123 = vmatprep.subr.mxu0 0.0
    %124 = vmatpush1.msra.mxu0 %v95
    %125 = vmatprep.subr.mxu0 0.0
    %126 = vmatpush1.msra.mxu0 %v96
    %127 = vmatprep.subr.mxu0 0.0
    %128 = vmatpush1.msra.mxu0 %v97
    %129 = vmatprep.subr.mxu0 0.0
    %130 = vmatpush1.msra.mxu0 %v98
    %131 = vmatprep.subr.mxu0 0.0
    %132 = vmatpush1.msra.mxu0 %v99
    %133 = vmatprep.subr.mxu0 0.0
    %134 = vmatpush1.msra.mxu0 %v100
    %135 = vmatprep.subr.mxu0 0.0
    %136 = vmatpush1.msra.mxu0 %v101
    %137 = vmatprep.subr.mxu0 0.0
    %138 = vmatpush1.msra.mxu0 %v102
    %139 = vmatprep.subr.mxu0 0.0
    %140 = vmatpush1.msra.mxu0 %v103
    %141 = vmatprep.subr.mxu0 0.0
    %142 = vmatpush1.msra.mxu0 %v104
    %143 = vmatprep.subr.mxu0 0.0
    %144 = vmatpush1.msra.mxu0 %v105
    %145 = vmatprep.subr.mxu0 0.0
    %146 = vmatpush1.msra.mxu0 0.0
    %147 = vmatprep.subr.mxu0 0.0
    %148 = vmatpush1.msra.mxu0 0.0
    %149 = vmatprep.subr.mxu0 0.0
    %150 = vmatpush1.msra.mxu0 0.0
    %151 = vmatprep.subr.mxu0 0.0
    %152 = vmatpush1.msra.mxu0 0.0
    %153 = vmatprep.subr.mxu0 0.0
    %154 = vmatpush1.msra.mxu0 0.0
    %155 = vmatprep.subr.mxu0 0.0
    %156 = vmatpush1.msra.mxu0 0.0
    %157 = vmatprep.subr.mxu0 0.0
    %158 = vmatpush1.msra.mxu0 0.0
    %159 = vmatprep.subr.mxu0 0.0
    %160 = vmatpush1.msra.mxu0 0.0
    %161 = vmatprep.subr.mxu0 0.0
    %162 = vmatpush1.msra.mxu0 0.0
    %163 = vmatprep.subr.mxu0 0.0
    %164 = vmatpush1.msra.mxu0 0.0
    %165 = vmatprep.subr.mxu0 0.0
    %166 = vmatpush1.msra.mxu0 0.0
    %167 = vmatprep.subr.mxu0 0.0
    %168 = vmatpush1.msra.mxu0 0.0
    %169 = vmatprep.subr.mxu0 0.0
    %170 = vmatpush1.msra.mxu0 0.0
    %171 = vmatprep.subr.mxu0 0.0
    %172 = vmatpush1.msra.mxu0 0.0
    %173 = vmatprep.subr.mxu0 0.0
    %174 = vmatpush1.msra.mxu0 0.0
    %175 = vmatprep.subr.mxu0 0.0
    %176 = vmatpush1.msra.mxu0 0.0
    %177 = vmatprep.mubr.f32.mxu0 0.0
    %178 = vmatmul.mubr.f32.gmra.mrb[0].mxu0 %v86
    %v179 = vpop.f32.mrb[0].mxu0
    %v180 = vadd.f32 %v111, %v179
    %v181 = vpop.f32.mrb[0].mxu0
    %182 = vmatprep.mubr.f32.mxu0 0.0
    %183 = vmatmul.mubr.f32.gmra.mrb[0].mxu0 %v87
    %v184 = vpop.f32.mrb[0].mxu0
    %v185 = vadd.f32 %v111, %v184
    %v186 = vpop.f32.mrb[0].mxu0
    %187 = vmatprep.mubr.f32.mxu0 0.0
    %188 = vmatmul.mubr.f32.gmra.mrb[0].mxu0 %v88
    %v189 = vpop.f32.mrb[0].mxu0
    %v190 = vadd.f32 %v111, %v189
    %v191 = vpop.f32.mrb[0].mxu0
    %192 = vmatprep.mubr.f32.mxu0 0.0
    %193 = vmatmul.mubr.f32.gmra.mrb[0].mxu0 %v89
    %v194 = vpop.f32.mrb[0].mxu0
    %v195 = vadd.f32 %v111, %v194
    %v196 = vpop.f32.mrb[0].mxu0
    %197 = vdwg.mxu0
    %v198 = vld [vmem:[#allocation7] sm:$0xff]
    %v199 = vld [vmem:[#allocation7 + $0x8] sm:$0xff]
    %v200 = vld [vmem:[#allocation7 + $0x10] sm:$0xff]
    %v201 = vld [vmem:[#allocation7 + $0x18] sm:$0xff]
    %v202 = vld [vmem:[#allocation7 + $0x20] sm:$0xff]
    %v203 = vld [vmem:[#allocation7 + $0x28] sm:$0xff]
    %v204 = vld [vmem:[#allocation7 + $0x30] sm:$0xff]
    %v205 = vld [vmem:[#allocation7 + $0x38] sm:$0xff]
    %v206 = vld [vmem:[#allocation7 + $0x40] sm:$0xff]
    %v207 = vld [vmem:[#allocation7 + $0x48] sm:$0xff]
    %v208 = vld [vmem:[#allocation7 + $0x50] sm:$0xff]
    %v209 = vld [vmem:[#allocation7 + $0x58] sm:$0xff]
    %v210 = vld [vmem:[#allocation7 + $0x60] sm:$0xff]
    %v211 = vld [vmem:[#allocation7 + $0x68] sm:$0xff]
    %v212 = vld [vmem:[#allocation7 + $0x70] sm:$0xff]
    %v213 = vld [vmem:[#allocation7 + $0x78] sm:$0xff]
    %v214 = vld [vmem:[%s5] sm:$0x1]
    %v216 = vlaneseq
    %v217 = vshrl.u32 %v216, 7
    %v218 = vsub.s32 0, %v217
    %v219 = vrot.slane %v214, %v218
    %221 = vmatprep.subr.mxu0 0.0
    %222 = vmatpush1.msra.mxu0 %v198
    %223 = vmatprep.subr.mxu0 0.0
    %224 = vmatpush1.msra.mxu0 %v199
    %225 = vmatprep.subr.mxu0 0.0
    %226 = vmatpush1.msra.mxu0 %v200
    %227 = vmatprep.subr.mxu0 0.0
    %228 = vmatpush1.msra.mxu0 %v201
    %229 = vmatprep.subr.mxu0 0.0
    %230 = vmatpush1.msra.mxu0 %v202
    %231 = vmatprep.subr.mxu0 0.0
    %232 = vmatpush1.msra.mxu0 %v203
    %233 = vmatprep.subr.mxu0 0.0
    %234 = vmatpush1.msra.mxu0 %v204
    %235 = vmatprep.subr.mxu0 0.0
    %236 = vmatpush1.msra.mxu0 %v205
    %237 = vmatprep.subr.mxu0 0.0
    %238 = vmatpush1.msra.mxu0 %v206
    %239 = vmatprep.subr.mxu0 0.0
    %240 = vmatpush1.msra.mxu0 %v207
    %241 = vmatprep.subr.mxu0 0.0
    %242 = vmatpush1.msra.mxu0 %v208
    %243 = vmatprep.subr.mxu0 0.0
    %244 = vmatpush1.msra.mxu0 %v209
    %245 = vmatprep.subr.mxu0 0.0
    %246 = vmatpush1.msra.mxu0 %v210
    %247 = vmatprep.subr.mxu0 0.0
    %248 = vmatpush1.msra.mxu0 %v211
    %249 = vmatprep.subr.mxu0 0.0
    %250 = vmatpush1.msra.mxu0 %v212
    %251 = vmatprep.subr.mxu0 0.0
    %252 = vmatpush1.msra.mxu0 %v213
    %253 = vmatprep.subr.mxu0 0.0
    %254 = vmatpush1.msra.mxu0 0.0
    %255 = vmatprep.subr.mxu0 0.0
    %256 = vmatpush1.msra.mxu0 0.0
    %257 = vmatprep.subr.mxu0 0.0
    %258 = vmatpush1.msra.mxu0 0.0
    %259 = vmatprep.subr.mxu0 0.0
    %260 = vmatpush1.msra.mxu0 0.0
    %261 = vmatprep.subr.mxu0 0.0
    %262 = vmatpush1.msra.mxu0 0.0
    %263 = vmatprep.subr.mxu0 0.0
    %264 = vmatpush1.msra.mxu0 0.0
    %265 = vmatprep.subr.mxu0 0.0
    %266 = vmatpush1.msra.mxu0 0.0
    %267 = vmatprep.subr.mxu0 0.0
    %268 = vmatpush1.msra.mxu0 0.0
    %269 = vmatprep.subr.mxu0 0.0
    %270 = vmatpush1.msra.mxu0 0.0
    %271 = vmatprep.subr.mxu0 0.0
    %272 = vmatpush1.msra.mxu0 0.0
    %273 = vmatprep.subr.mxu0 0.0
    %274 = vmatpush1.msra.mxu0 0.0
    %275 = vmatprep.subr.mxu0 0.0
    %276 = vmatpush1.msra.mxu0 0.0
    %277 = vmatprep.subr.mxu0 0.0
    %278 = vmatpush1.msra.mxu0 0.0
    %279 = vmatprep.subr.mxu0 0.0
    %280 = vmatpush1.msra.mxu0 0.0
    %281 = vmatprep.subr.mxu0 0.0
    %282 = vmatpush1.msra.mxu0 0.0
    %283 = vmatprep.subr.mxu0 0.0
    %284 = vmatpush1.msra.mxu0 0.0
    %285 = vmatprep.mubr.f32.mxu0 0.0
    %286 = vmatmul.mubr.f32.gmra.mrb[0].mxu0 %v86
    %v287 = vpop.f32.mrb[0].mxu0
    %v288 = vadd.f32 %v219, %v287
    %v289 = vpop.f32.mrb[0].mxu0
    %290 = vmatprep.mubr.f32.mxu0 0.0
    %291 = vmatmul.mubr.f32.gmra.mrb[0].mxu0 %v87
    %v292 = vpop.f32.mrb[0].mxu0
    %v293 = vadd.f32 %v219, %v292
    %v294 = vpop.f32.mrb[0].mxu0
    %295 = vmatprep.mubr.f32.mxu0 0.0
    %296 = vmatmul.mubr.f32.gmra.mrb[0].mxu0 %v88
    %v297 = vpop.f32.mrb[0].mxu0
    %v298 = vadd.f32 %v219, %v297
    %v299 = vpop.f32.mrb[0].mxu0
    %300 = vmatprep.mubr.f32.mxu0 0.0
    %301 = vmatmul.mubr.f32.gmra.mrb[0].mxu0 %v89
    %v302 = vpop.f32.mrb[0].mxu0
    %v303 = vadd.f32 %v219, %v302
    %v304 = vpop.f32.mrb[0].mxu0
    %305 = vdwg.mxu0
    %v306 = vld [vmem:[#allocation8] sm:$0xff]
    %v307 = vld [vmem:[#allocation8 + $0x8] sm:$0xff]
    %v308 = vld [vmem:[#allocation8 + $0x10] sm:$0xff]
    %v309 = vld [vmem:[#allocation8 + $0x18] sm:$0xff]
    %v310 = vld [vmem:[#allocation8 + $0x20] sm:$0xff]
    %v311 = vld [vmem:[#allocation8 + $0x28] sm:$0xff]
    %v312 = vld [vmem:[#allocation8 + $0x30] sm:$0xff]
    %v313 = vld [vmem:[#allocation8 + $0x38] sm:$0xff]
    %v314 = vld [vmem:[#allocation8 + $0x40] sm:$0xff]
    %v315 = vld [vmem:[#allocation8 + $0x48] sm:$0xff]
    %v316 = vld [vmem:[#allocation8 + $0x50] sm:$0xff]
    %v317 = vld [vmem:[#allocation8 + $0x58] sm:$0xff]
    %v318 = vld [vmem:[#allocation8 + $0x60] sm:$0xff]
    %v319 = vld [vmem:[#allocation8 + $0x68] sm:$0xff]
    %v320 = vld [vmem:[#allocation8 + $0x70] sm:$0xff]
    %v321 = vld [vmem:[#allocation8 + $0x78] sm:$0xff]
    %v322 = vld [vmem:[%s6] sm:$0x1]
    %v324 = vlaneseq
    %v325 = vshrl.u32 %v324, 7
    %v326 = vsub.s32 0, %v325
    %v327 = vrot.slane %v322, %v326
    %329 = vmatprep.subr.mxu0 0.0
    %330 = vmatpush1.msra.mxu0 %v306
    %331 = vmatprep.subr.mxu0 0.0
    %332 = vmatpush1.msra.mxu0 %v307
    %333 = vmatprep.subr.mxu0 0.0
    %334 = vmatpush1.msra.mxu0 %v308
    %335 = vmatprep.subr.mxu0 0.0
    %336 = vmatpush1.msra.mxu0 %v309
    %337 = vmatprep.subr.mxu0 0.0
    %338 = vmatpush1.msra.mxu0 %v310
    %339 = vmatprep.subr.mxu0 0.0
    %340 = vmatpush1.msra.mxu0 %v311
    %341 = vmatprep.subr.mxu0 0.0
    %342 = vmatpush1.msra.mxu0 %v312
    %343 = vmatprep.subr.mxu0 0.0
    %344 = vmatpush1.msra.mxu0 %v313
    %345 = vmatprep.subr.mxu0 0.0
    %346 = vmatpush1.msra.mxu0 %v314
    %347 = vmatprep.subr.mxu0 0.0
    %348 = vmatpush1.msra.mxu0 %v315
    %349 = vmatprep.subr.mxu0 0.0
    %350 = vmatpush1.msra.mxu0 %v316
    %351 = vmatprep.subr.mxu0 0.0
    %352 = vmatpush1.msra.mxu0 %v317
    %353 = vmatprep.subr.mxu0 0.0
    %354 = vmatpush1.msra.mxu0 %v318
    %355 = vmatprep.subr.mxu0 0.0
    %356 = vmatpush1.msra.mxu0 %v319
    %357 = vmatprep.subr.mxu0 0.0
    %358 = vmatpush1.msra.mxu0 %v320
    %359 = vmatprep.subr.mxu0 0.0
    %360 = vmatpush1.msra.mxu0 %v321
    %361 = vmatprep.subr.mxu0 0.0
    %362 = vmatpush1.msra.mxu0 0.0
    %363 = vmatprep.subr.mxu0 0.0
    %364 = vmatpush1.msra.mxu0 0.0
    %365 = vmatprep.subr.mxu0 0.0
    %366 = vmatpush1.msra.mxu0 0.0
    %367 = vmatprep.subr.mxu0 0.0
    %368 = vmatpush1.msra.mxu0 0.0
    %369 = vmatprep.subr.mxu0 0.0
    %370 = vmatpush1.msra.mxu0 0.0
    %371 = vmatprep.subr.mxu0 0.0
    %372 = vmatpush1.msra.mxu0 0.0
    %373 = vmatprep.subr.mxu0 0.0
    %374 = vmatpush1.msra.mxu0 0.0
    %375 = vmatprep.subr.mxu0 0.0
    %376 = vmatpush1.msra.mxu0 0.0
    %377 = vmatprep.subr.mxu0 0.0
    %378 = vmatpush1.msra.mxu0 0.0
    %379 = vmatprep.subr.mxu0 0.0
    %380 = vmatpush1.msra.mxu0 0.0
    %381 = vmatprep.subr.mxu0 0.0
    %382 = vmatpush1.msra.mxu0 0.0
    %383 = vmatprep.subr.mxu0 0.0
    %384 = vmatpush1.msra.mxu0 0.0
    %385 = vmatprep.subr.mxu0 0.0
    %386 = vmatpush1.msra.mxu0 0.0
    %387 = vmatprep.subr.mxu0 0.0
    %388 = vmatpush1.msra.mxu0 0.0
    %389 = vmatprep.subr.mxu0 0.0
    %390 = vmatpush1.msra.mxu0 0.0
    %391 = vmatprep.subr.mxu0 0.0
    %392 = vmatpush1.msra.mxu0 0.0
    %393 = vmatprep.mubr.f32.mxu0 0.0
    %394 = vmatmul.mubr.f32.gmra.mrb[0].mxu0 %v86
    %v395 = vpop.f32.mrb[0].mxu0
    %v396 = vadd.f32 %v327, %v395
    %v397 = vpop.f32.mrb[0].mxu0
    %398 = vmatprep.mubr.f32.mxu0 0.0
    %399 = vmatmul.mubr.f32.gmra.mrb[0].mxu0 %v87
    %v400 = vpop.f32.mrb[0].mxu0
    %v401 = vadd.f32 %v327, %v400
    %v402 = vpop.f32.mrb[0].mxu0
    %403 = vmatprep.mubr.f32.mxu0 0.0
    %404 = vmatmul.mubr.f32.gmra.mrb[0].mxu0 %v88
    %v405 = vpop.f32.mrb[0].mxu0
    %v406 = vadd.f32 %v327, %v405
    %v407 = vpop.f32.mrb[0].mxu0
    %408 = vmatprep.mubr.f32.mxu0 0.0
    %409 = vmatmul.mubr.f32.gmra.mrb[0].mxu0 %v89
    %v410 = vpop.f32.mrb[0].mxu0
    %v411 = vadd.f32 %v327, %v410
    %v412 = vpop.f32.mrb[0].mxu0
    %413 = vdwg.mxu0
    %v414 = vmul.f32 %v180, 0.17677669
    %v415 = vmul.f32 %v185, 0.17677669
    %v416 = vmul.f32 %v190, 0.17677669
    %v417 = vmul.f32 %v195, 0.17677669
    %418 = vst [vmem:[#allocation10] sm:$0xff] %v414
    %419 = vst [vmem:[#allocation10 + $0x8] sm:$0xff] %v415
    %420 = vst [vmem:[#allocation10 + $0x10] sm:$0xff] %v416
    %421 = vst [vmem:[#allocation10 + $0x18] sm:$0xff] %v417
    %422 = vst [vmem:[#allocation11] sm:$0xff] %v288
    %423 = vst [vmem:[#allocation11 + $0x8] sm:$0xff] %v293
    %424 = vst [vmem:[#allocation11 + $0x10] sm:$0xff] %v298
    %425 = vst [vmem:[#allocation11 + $0x18] sm:$0xff] %v303
    %426 = vst [vmem:[#allocation13] sm:$0xff] %v396
    %427 = vst [vmem:[#allocation13 + $0x8] sm:$0xff] %v401
    %428 = vst [vmem:[#allocation13 + $0x10] sm:$0xff] %v406
    %429 = vst [vmem:[#allocation13 + $0x18] sm:$0xff] %v411
    // Predicated region
    $region46: #{tpu_custom_call.1} parent=1 // pred_check
      _
    $region47: #{tpu_custom_call.1} parent=1 // pred_check_branch
      %431 = sbr.rel (0) target = $region49
    $region48: #{tpu_custom_call.1} parent=1 // pred_region
      %s433 = ssub.s32 512, 512
      %434 = vsyncadd [#allocation4], %s433
      %s435 = sshll.u32 [#allocation10], 4
      %s436 = int_to_ptr.vmem [resolvable:$true] %s435
      %441 = dma.vmem_to_hbm [thread:$0]  %s436, 512, %s7, [#allocation4], 128, 128, 8
    $region49: #{tpu_custom_call.1} parent=1 // pred_fallthru
      _
    // Predicated region
    $region50: #{tpu_custom_call.1} parent=1 // pred_check
      _
    $region51: #{tpu_custom_call.1} parent=1 // pred_check_branch
      %443 = sbr.rel (0) target = $region53
    $region52: #{tpu_custom_call.1} parent=1 // pred_region
      %s445 = ssub.s32 512, 512
      %446 = vsyncadd [#allocation12], %s445
      %s447 = sshll.u32 [#allocation11], 4
      %s448 = int_to_ptr.vmem [resolvable:$true] %s447
      %453 = dma.vmem_to_hbm [thread:$0]  %s448, 512, %s8, [#allocation12], 128, 128, 8
    $region53: #{tpu_custom_call.1} parent=1 // pred_fallthru
      _
    // Predicated region
    $region54: #{tpu_custom_call.1} parent=1 // pred_check
      _
    $region55: #{tpu_custom_call.1} parent=1 // pred_check_branch
      %455 = sbr.rel (0) target = $region57
    $region56: #{tpu_custom_call.1} parent=1 // pred_region
      %s457 = ssub.s32 512, 512
      %458 = vsyncadd [#allocation12], %s457
      %s459 = sshll.u32 [#allocation13], 4
      %s460 = int_to_ptr.vmem [resolvable:$true] %s459
      %465 = dma.vmem_to_hbm [thread:$0]  %s460, 512, %s9, [#allocation12], 128, 128, 8
    $region57: #{tpu_custom_call.1} parent=1 // pred_fallthru
      _
    // Predicated region
    $region58: #{tpu_custom_call.1} parent=1 // pred_check
      _
    $region59: #{tpu_custom_call.1} parent=1 // pred_check_branch
      %467 = sbr.rel (0) target = $region61
    $region60: #{tpu_custom_call.1} parent=1 // pred_region
      %468 = dma.done [#allocation4], 512
    $region61: #{tpu_custom_call.1} parent=1 // pred_fallthru
      _
    // Predicated region
    $region62: #{tpu_custom_call.1} parent=1 // pred_check
      _
    $region63: #{tpu_custom_call.1} parent=1 // pred_check_branch
      %470 = sbr.rel (0) target = $region65
    $region64: #{tpu_custom_call.1} parent=1 // pred_region
      %471 = dma.done [#allocation12], 512
    $region65: #{tpu_custom_call.1} parent=1 // pred_fallthru
      _
    // Predicated region
    $region66: #{tpu_custom_call.1} parent=1 // pred_check
      _
    $region67: #{tpu_custom_call.1} parent=1 // pred_check_branch
      %473 = sbr.rel (0) target = $region69
    $region68: #{tpu_custom_call.1} parent=1 // pred_region
      %474 = dma.done [#allocation12], 512
    $region69: #{tpu_custom_call.1} parent=1 // pred_fallthru
      _
    %475 = vsyncpa [#allocation3], 1
    %476 = vsyncpa [#allocation6], 1
    %477 = vsyncpa [#allocation9], 1
    %478 = vsyncpa [#allocation4], 1
    %479 = vsyncpa [#allocation12], 1

</llo_original>
